<compile_context>
chip_gen: v7x
topology: tpu7x:2x2x1
jax: 0.10.0
libtpu: 0.0.40
codegen_flags: <defaults>
</compile_context>

<pallas_src>
import functools

import jax
import jax.numpy as jnp
from jax.experimental import pallas as pl
from jax.experimental.pallas import tpu as pltpu


HIDDEN = 64
LANE = 128               # TPU lane width: hidden feature dim is padded to this
DEFAULT_TM = 1024        # batch rows per grid step
MEGACORE_MIN_TILE = 64   # only force a >=2-step grid when each tile has >= this many rows


def _round_up(v, m):
    return (v + m - 1) // m * m


def _pad2(a, rows, cols):
    """Zero-pad a 2-D array up to (rows, cols)."""
    return jnp.pad(a, ((0, rows - a.shape[0]), (0, cols - a.shape[1])))


def _mlp_kernel(*refs, has_cond, out_dim):
    if has_cond:
        (x_ref, c_ref, w1x_ref, w1c_ref, b1_ref,
         w2_ref, b2_ref, w3_ref, b3_ref, w4_ref, b4_ref, out_ref) = refs
    else:
        (x_ref, w1x_ref, b1_ref,
         w2_ref, b2_ref, w3_ref, b3_ref, w4_ref, b4_ref, out_ref) = refs

    # Layer 1: split matmul replaces torch.cat([x, c], -1) @ W1.
    # MXU operands in bf16, accumulation + bias + ReLU in f32.
    z = jnp.dot(x_ref[...].astype(jnp.bfloat16), w1x_ref[...],
                preferred_element_type=jnp.float32)
    if has_cond:
        z = z + jnp.dot(c_ref[...].astype(jnp.bfloat16), w1c_ref[...],
                        preferred_element_type=jnp.float32)
    z = jnp.maximum(z + b1_ref[...], 0.0)

    z = jnp.maximum(
        jnp.dot(z.astype(jnp.bfloat16), w2_ref[...],
                preferred_element_type=jnp.float32) + b2_ref[...], 0.0)
    z = jnp.maximum(
        jnp.dot(z.astype(jnp.bfloat16), w3_ref[...],
                preferred_element_type=jnp.float32) + b3_ref[...], 0.0)
    z = jnp.dot(z.astype(jnp.bfloat16), w4_ref[...],
                preferred_element_type=jnp.float32) + b4_ref[...]

    # Store only the real output columns (lane padding never leaves VMEM).
    out_ref[...] = z[:, :out_dim].astype(out_ref.dtype)


def prepare_params(params, input_dim):
    """One-time padding + bf16 cast of the weights (hoisted out of the forward path)."""
    (w1, b1), (w2, b2), (w3, b3), (w4, b4) = params
    out_dim = w4.shape[1]
    cond_dim = w1.shape[0] - input_dim
    hid_p = _round_up(HIDDEN, LANE)   # 64  -> 128
    out_p = _round_up(out_dim, LANE)  # 10  -> 128

    w1x = _pad2(w1[:input_dim], input_dim, hid_p).astype(jnp.bfloat16)
    w1c = (_pad2(w1[input_dim:], cond_dim, hid_p).astype(jnp.bfloat16)
           if cond_dim > 0 else None)
    return dict(
        w1x=w1x, w1c=w1c,
        b1=_pad2(b1, 1, hid_p).astype(jnp.float32),
        w2=_pad2(w2, hid_p, hid_p).astype(jnp.bfloat16),
        b2=_pad2(b2, 1, hid_p).astype(jnp.float32),
        w3=_pad2(w3, hid_p, hid_p).astype(jnp.bfloat16),
        b3=_pad2(b3, 1, hid_p).astype(jnp.float32),
        w4=_pad2(w4, hid_p, out_p).astype(jnp.bfloat16),
        b4=_pad2(b4, 1, out_p).astype(jnp.float32),
        input_dim=input_dim, cond_dim=cond_dim,
        out_dim=out_dim, hid_p=hid_p, out_p=out_p,
    )


def mlp_forward(x, c, prepared, tm=DEFAULT_TM):
    """Pallas implementation of MLP.forward(x, c). `c` may be None."""
    batch, input_dim = x.shape
    has_cond = c is not None
    cond_dim = c.shape[-1] if has_cond else 0
    out_dim = prepared["out_dim"]
    hid_p = prepared["hid_p"]
    out_p = prepared["out_p"]

    # ---- Batch tiling: minimal row padding, balanced tiles, >=2 tiles for megacore ----
    tm = _round_up(max(int(tm), 8), 8)
    bp8 = max(8, _round_up(batch, 8))
    num_tiles = pl.cdiv(bp8, tm)
    if num_tiles < 2 and bp8 >= 2 * MEGACORE_MIN_TILE:
        num_tiles = 2                     # let v7x shard the grid across both TCs
    tm_eff = _round_up(pl.cdiv(bp8, num_tiles), 8)
    bp = num_tiles * tm_eff               # padding is at most num_tiles*8 - 1 rows
    grid = (num_tiles,)

    x_p = jnp.pad(x, ((0, bp - batch), (0, 0)))

    inputs = [x_p]
    in_specs = [pl.BlockSpec((tm_eff, input_dim), lambda i: (i, 0))]
    if has_cond:
        c_p = jnp.pad(c, ((0, bp - batch), (0, 0)))
        inputs += [c_p, prepared["w1x"], prepared["w1c"]]
        in_specs += [
            pl.BlockSpec((tm_eff, cond_dim), lambda i: (i, 0)),
            pl.BlockSpec(prepared["w1x"].shape, lambda i: (0, 0)),
            pl.BlockSpec(prepared["w1c"].shape, lambda i: (0, 0)),
        ]
    else:
        inputs += [prepared["w1x"]]
        in_specs += [pl.BlockSpec(prepared["w1x"].shape, lambda i: (0, 0))]

    # Remaining params stay VMEM-resident across all grid steps (constant index_map).
    for name in ("b1", "w2", "b2", "w3", "b3", "w4", "b4"):
        p = prepared[name]
        inputs.append(p)
        in_specs.append(pl.BlockSpec(p.shape, lambda i: (0, 0)))

    flops = 2 * bp * ((input_dim + cond_dim) * hid_p + 2 * hid_p * hid_p + hid_p * out_p)
    weight_bytes = (2 * ((input_dim + cond_dim) * hid_p + 2 * hid_p * hid_p + hid_p * out_p)
                    + 4 * (3 * hid_p + out_p))
    io_bytes = 4 * bp * (input_dim + cond_dim) + x.dtype.itemsize * bp * out_dim

    out = pl.pallas_call(
        functools.partial(_mlp_kernel, has_cond=has_cond, out_dim=out_dim),
        out_shape=jax.ShapeDtypeStruct((bp, out_dim), x.dtype),
        grid=grid,
        in_specs=in_specs,
        out_specs=pl.BlockSpec((tm_eff, out_dim), lambda i: (i, 0)),
        compiler_params=pltpu.CompilerParams(
            dimension_semantics=("parallel",)),
        cost_estimate=pl.CostEstimate(
            flops=flops, transcendentals=0,
            bytes_accessed=weight_bytes + io_bytes),
    )(*inputs)

    # Slice away the (small) batch padding; output columns are already unpadded.
    return out[:batch]


def init_mlp_params(key, input_dim, cond_dim, output_dim, hidden=HIDDEN):
    """Deterministic init mimicking nn.Linear default (uniform(+/- 1/sqrt(fan_in)))."""
    dims = [input_dim + cond_dim, hidden, hidden, hidden, output_dim]
    params = []
    for i in range(4):
        fan_in, fan_out = dims[i], dims[i + 1]
        key, kw, kb = jax.random.split(key, 3)
        bound = 1.0 / jnp.sqrt(jnp.float32(fan_in))
        w = jax.random.uniform(kw, (fan_in, fan_out), jnp.float32, -bound, bound)
        b = jax.random.uniform(kb, (1, fan_out), jnp.float32, -bound, bound)
        params.append((w, b))
    return params


def mlp_reference(x, c, params, matmul_dtype=None):
    """Pure-JAX reference. matmul_dtype=bf16 mirrors the kernel's MXU operand precision."""
    z = x if c is None else jnp.concatenate([x, c], axis=-1)
    n = len(params)
    for i, (w, b) in enumerate(params):
        lhs = z if matmul_dtype is None else z.astype(matmul_dtype)
        rhs = w if matmul_dtype is None else w.astype(matmul_dtype)
        z = jnp.dot(lhs, rhs, preferred_element_type=jnp.float32) + b
        if i < n - 1:
            z = jnp.maximum(z, 0.0)
    return z


if __name__ == "__main__":
    batch, input_dim, cond_dim, output_dim = 8, 16, 8, 10

    key = jax.random.PRNGKey(0)
    kx, kc, kp, kp2, kx2, kc2 = jax.random.split(key, 6)
    x = jax.random.normal(kx, (batch, input_dim), jnp.float32)
    c = jax.random.normal(kc, (batch, cond_dim), jnp.float32)
    params = init_mlp_params(kp, input_dim, cond_dim, output_dim)
    prepared = prepare_params(params, input_dim)            # one-time pad + bf16 cast

    # 1) small batch, with conditioning (single grid step)
    out = jax.block_until_ready(mlp_forward(x, c, prepared))
    assert out.shape == (batch, output_dim)
    ref_bf16 = mlp_reference(x, c, params, matmul_dtype=jnp.bfloat16)
    ref_f32 = mlp_reference(x, c, params)
    assert jnp.allclose(out, ref_bf16, atol=1e-4, rtol=1e-4), "mismatch vs bf16 reference (x, c)"
    assert jnp.allclose(out, ref_f32, atol=2e-2, rtol=2e-2), "drift vs f32 reference (x, c)"

    # 2) c=None path (no conditioning input)
    params_nc = init_mlp_params(kp2, input_dim, 0, output_dim)
    prepared_nc = prepare_params(params_nc, input_dim)
    out_nc = jax.block_until_ready(mlp_forward(x, None, prepared_nc))
    ref_nc = mlp_reference(x, None, params_nc, matmul_dtype=jnp.bfloat16)
    assert jnp.allclose(out_nc, ref_nc, atol=1e-4, rtol=1e-4), "mismatch vs reference (x only)"

    # 3) larger batch, explicit tm=256: 3 balanced tiles of 200 rows, zero row padding
    big_batch = 600
    xb = jax.random.normal(kx2, (big_batch, input_dim), jnp.float32)
    cb = jax.random.normal(kc2, (big_batch, cond_dim), jnp.float32)
    out_b = jax.block_until_ready(mlp_forward(xb, cb, prepared, tm=256))
    ref_b = mlp_reference(xb, cb, params, matmul_dtype=jnp.bfloat16)
    assert out_b.shape == (big_batch, output_dim)
    assert jnp.allclose(out_b, ref_b, atol=1e-4, rtol=1e-4), "mismatch vs reference (grid path)"

    # 4) default TM path: megacore rule splits 600 rows into 2 tiles of 304 (8 pad rows)
    out_b2 = jax.block_until_ready(mlp_forward(xb, cb, prepared))
    assert jnp.allclose(out_b2, ref_b, atol=1e-4, rtol=1e-4), "mismatch vs reference (default TM)"

    print("KERNEL_OK")
</pallas_src>

<mosaic_0001>
module attributes {stable_mosaic.version = 11 : i64} {
  func.func @_mlp_kernel(%arg0: i32, %arg1: memref<8x16xf32, #tpu.memory_space<vmem>>, %arg2: memref<8x8xf32, #tpu.memory_space<vmem>>, %arg3: memref<16x128xbf16, #tpu.memory_space<vmem>>, %arg4: memref<8x128xbf16, #tpu.memory_space<vmem>>, %arg5: memref<1x128xf32, #tpu.memory_space<vmem>>, %arg6: memref<128x128xbf16, #tpu.memory_space<vmem>>, %arg7: memref<1x128xf32, #tpu.memory_space<vmem>>, %arg8: memref<128x128xbf16, #tpu.memory_space<vmem>>, %arg9: memref<1x128xf32, #tpu.memory_space<vmem>>, %arg10: memref<128x128xbf16, #tpu.memory_space<vmem>>, %arg11: memref<1x128xf32, #tpu.memory_space<vmem>>, %arg12: memref<8x10xf32, #tpu.memory_space<vmem>>) attributes {dimension_semantics = [#tpu.dimension_semantics<parallel>], iteration_bounds = array<i64: 1>, scalar_prefetch = 0 : i64, scratch_operands = 0 : i64, tpu.core_type = #tpu.core_type<tc>, window_params = [{transform_indices = @transform_0, window_bounds = array<i64: 8, 16>}, {transform_indices = @transform_1, window_bounds = array<i64: 8, 8>}, {pipeline_mode = #tpu.pipeline_mode<synchronous>, transform_indices = @transform_2, window_bounds = array<i64: 16, 128>}, {pipeline_mode = #tpu.pipeline_mode<synchronous>, transform_indices = @transform_3, window_bounds = array<i64: 8, 128>}, {pipeline_mode = #tpu.pipeline_mode<synchronous>, transform_indices = @transform_4, window_bounds = array<i64: 1, 128>}, {pipeline_mode = #tpu.pipeline_mode<synchronous>, transform_indices = @transform_5, window_bounds = array<i64: 128, 128>}, {pipeline_mode = #tpu.pipeline_mode<synchronous>, transform_indices = @transform_6, window_bounds = array<i64: 1, 128>}, {pipeline_mode = #tpu.pipeline_mode<synchronous>, transform_indices = @transform_7, window_bounds = array<i64: 128, 128>}, {pipeline_mode = #tpu.pipeline_mode<synchronous>, transform_indices = @transform_8, window_bounds = array<i64: 1, 128>}, {pipeline_mode = #tpu.pipeline_mode<synchronous>, transform_indices = @transform_9, window_bounds = array<i64: 128, 128>}, {pipeline_mode = #tpu.pipeline_mode<synchronous>, transform_indices = @transform_10, window_bounds = array<i64: 1, 128>}, {transform_indices = @transform_11, window_bounds = array<i64: 8, 10>}]} {
    %c0 = arith.constant 0 : index
    %c0_0 = arith.constant 0 : index
    %0 = vector.load %arg1[%c0, %c0_0] : memref<8x16xf32, #tpu.memory_space<vmem>>, vector<8x16xf32>
    %1 = arith.truncf %0 : vector<8x16xf32> to vector<8x16xbf16>
    %c0_1 = arith.constant 0 : index
    %c0_2 = arith.constant 0 : index
    %2 = vector.load %arg3[%c0_1, %c0_2] : memref<16x128xbf16, #tpu.memory_space<vmem>>, vector<16x128xbf16>
    %cst = arith.constant dense<0.000000e+00> : vector<8x128xf32>
    %3 = tpu.matmul %1, %2, %cst {dimension_numbers = #tpu.dot_dimension_numbers<[1], [0], [0], [1], [0, 0, 1, 1], [], []>} : vector<8x16xbf16>, vector<16x128xbf16>, vector<8x128xf32> -> vector<8x128xf32>
    %c0_3 = arith.constant 0 : index
    %c0_4 = arith.constant 0 : index
    %4 = vector.load %arg2[%c0_3, %c0_4] : memref<8x8xf32, #tpu.memory_space<vmem>>, vector<8x8xf32>
    %5 = arith.truncf %4 : vector<8x8xf32> to vector<8x8xbf16>
    %c0_5 = arith.constant 0 : index
    %c0_6 = arith.constant 0 : index
    %6 = vector.load %arg4[%c0_5, %c0_6] : memref<8x128xbf16, #tpu.memory_space<vmem>>, vector<8x128xbf16>
    %cst_7 = arith.constant dense<0.000000e+00> : vector<8x128xf32>
    %7 = tpu.matmul %5, %6, %cst_7 {dimension_numbers = #tpu.dot_dimension_numbers<[1], [0], [0], [1], [0, 0, 1, 1], [], []>} : vector<8x8xbf16>, vector<8x128xbf16>, vector<8x128xf32> -> vector<8x128xf32>
    %8 = arith.addf %3, %7 : vector<8x128xf32>
    %c0_8 = arith.constant 0 : index
    %c0_9 = arith.constant 0 : index
    %9 = vector.load %arg5[%c0_8, %c0_9] : memref<1x128xf32, #tpu.memory_space<vmem>>, vector<1x128xf32>
    %10 = vector.broadcast %9 : vector<1x128xf32> to vector<8x128xf32>
    %11 = arith.addf %8, %10 : vector<8x128xf32>
    %cst_10 = arith.constant 0.000000e+00 : f32
    %12 = vector.broadcast %cst_10 : f32 to vector<8x128xf32>
    %13 = arith.maximumf %11, %12 : vector<8x128xf32>
    %14 = arith.truncf %13 : vector<8x128xf32> to vector<8x128xbf16>
    %c0_11 = arith.constant 0 : index
    %c0_12 = arith.constant 0 : index
    %15 = vector.load %arg6[%c0_11, %c0_12] : memref<128x128xbf16, #tpu.memory_space<vmem>>, vector<128x128xbf16>
    %cst_13 = arith.constant dense<0.000000e+00> : vector<8x128xf32>
    %16 = tpu.matmul %14, %15, %cst_13 {dimension_numbers = #tpu.dot_dimension_numbers<[1], [0], [0], [1], [0, 0, 1, 1], [], []>} : vector<8x128xbf16>, vector<128x128xbf16>, vector<8x128xf32> -> vector<8x128xf32>
    %c0_14 = arith.constant 0 : index
    %c0_15 = arith.constant 0 : index
    %17 = vector.load %arg7[%c0_14, %c0_15] : memref<1x128xf32, #tpu.memory_space<vmem>>, vector<1x128xf32>
    %18 = vector.broadcast %17 : vector<1x128xf32> to vector<8x128xf32>
    %19 = arith.addf %16, %18 : vector<8x128xf32>
    %cst_16 = arith.constant 0.000000e+00 : f32
    %20 = vector.broadcast %cst_16 : f32 to vector<8x128xf32>
    %21 = arith.maximumf %19, %20 : vector<8x128xf32>
    %22 = arith.truncf %21 : vector<8x128xf32> to vector<8x128xbf16>
    %c0_17 = arith.constant 0 : index
    %c0_18 = arith.constant 0 : index
    %23 = vector.load %arg8[%c0_17, %c0_18] : memref<128x128xbf16, #tpu.memory_space<vmem>>, vector<128x128xbf16>
    %cst_19 = arith.constant dense<0.000000e+00> : vector<8x128xf32>
    %24 = tpu.matmul %22, %23, %cst_19 {dimension_numbers = #tpu.dot_dimension_numbers<[1], [0], [0], [1], [0, 0, 1, 1], [], []>} : vector<8x128xbf16>, vector<128x128xbf16>, vector<8x128xf32> -> vector<8x128xf32>
    %c0_20 = arith.constant 0 : index
    %c0_21 = arith.constant 0 : index
    %25 = vector.load %arg9[%c0_20, %c0_21] : memref<1x128xf32, #tpu.memory_space<vmem>>, vector<1x128xf32>
    %26 = vector.broadcast %25 : vector<1x128xf32> to vector<8x128xf32>
    %27 = arith.addf %24, %26 : vector<8x128xf32>
    %cst_22 = arith.constant 0.000000e+00 : f32
    %28 = vector.broadcast %cst_22 : f32 to vector<8x128xf32>
    %29 = arith.maximumf %27, %28 : vector<8x128xf32>
    %30 = arith.truncf %29 : vector<8x128xf32> to vector<8x128xbf16>
    %c0_23 = arith.constant 0 : index
    %c0_24 = arith.constant 0 : index
    %31 = vector.load %arg10[%c0_23, %c0_24] : memref<128x128xbf16, #tpu.memory_space<vmem>>, vector<128x128xbf16>
    %cst_25 = arith.constant dense<0.000000e+00> : vector<8x128xf32>
    %32 = tpu.matmul %30, %31, %cst_25 {dimension_numbers = #tpu.dot_dimension_numbers<[1], [0], [0], [1], [0, 0, 1, 1], [], []>} : vector<8x128xbf16>, vector<128x128xbf16>, vector<8x128xf32> -> vector<8x128xf32>
    %c0_26 = arith.constant 0 : index
    %c0_27 = arith.constant 0 : index
    %33 = vector.load %arg11[%c0_26, %c0_27] : memref<1x128xf32, #tpu.memory_space<vmem>>, vector<1x128xf32>
    %34 = vector.broadcast %33 : vector<1x128xf32> to vector<8x128xf32>
    %35 = arith.addf %32, %34 : vector<8x128xf32>
    %36 = vector.extract_strided_slice %35 {offsets = [0, 0], sizes = [8, 10], strides = [1, 1]} : vector<8x128xf32> to vector<8x10xf32>
    %c0_28 = arith.constant 0 : index
    %c0_29 = arith.constant 0 : index
    %37 = vector.load %arg12[%c0_28, %c0_29] : memref<8x10xf32, #tpu.memory_space<vmem>>, vector<8x10xf32>
    tpu.vector_store %arg12[%c0_28, %c0_29], %36 {strides = array<i32>} : memref<8x10xf32, #tpu.memory_space<vmem>>, vector<8x10xf32>,
    return
  }
  func.func @transform_0(%arg0: i32) -> (i32, i32) {
    %c0_i32 = arith.constant 0 : i32
    %c0_i32_0 = arith.constant 0 : i32
    return %arg0, %c0_i32 : i32, i32
  }
  func.func @transform_1(%arg0: i32) -> (i32, i32) {
    %c0_i32 = arith.constant 0 : i32
    %c0_i32_0 = arith.constant 0 : i32
    return %arg0, %c0_i32 : i32, i32
  }
  func.func @transform_2(%arg0: i32) -> (i32, i32) {
    %c0_i32 = arith.constant 0 : i32
    %c0_i32_0 = arith.constant 0 : i32
    %c0_i32_1 = arith.constant 0 : i32
    return %c0_i32, %c0_i32_0 : i32, i32
  }
  func.func @transform_3(%arg0: i32) -> (i32, i32) {
    %c0_i32 = arith.constant 0 : i32
    %c0_i32_0 = arith.constant 0 : i32
    %c0_i32_1 = arith.constant 0 : i32
    return %c0_i32, %c0_i32_0 : i32, i32
  }
  func.func @transform_4(%arg0: i32) -> (i32, i32) {
    %c0_i32 = arith.constant 0 : i32
    %c0_i32_0 = arith.constant 0 : i32
    %c0_i32_1 = arith.constant 0 : i32
    return %c0_i32, %c0_i32_0 : i32, i32
  }
  func.func @transform_5(%arg0: i32) -> (i32, i32) {
    %c0_i32 = arith.constant 0 : i32
    %c0_i32_0 = arith.constant 0 : i32
    %c0_i32_1 = arith.constant 0 : i32
    return %c0_i32, %c0_i32_0 : i32, i32
  }
  func.func @transform_6(%arg0: i32) -> (i32, i32) {
    %c0_i32 = arith.constant 0 : i32
    %c0_i32_0 = arith.constant 0 : i32
    %c0_i32_1 = arith.constant 0 : i32
    return %c0_i32, %c0_i32_0 : i32, i32
  }
  func.func @transform_7(%arg0: i32) -> (i32, i32) {
    %c0_i32 = arith.constant 0 : i32
    %c0_i32_0 = arith.constant 0 : i32
    %c0_i32_1 = arith.constant 0 : i32
    return %c0_i32, %c0_i32_0 : i32, i32
  }
  func.func @transform_8(%arg0: i32) -> (i32, i32) {
    %c0_i32 = arith.constant 0 : i32
    %c0_i32_0 = arith.constant 0 : i32
    %c0_i32_1 = arith.constant 0 : i32
    return %c0_i32, %c0_i32_0 : i32, i32
  }
  func.func @transform_9(%arg0: i32) -> (i32, i32) {
    %c0_i32 = arith.constant 0 : i32
    %c0_i32_0 = arith.constant 0 : i32
    %c0_i32_1 = arith.constant 0 : i32
    return %c0_i32, %c0_i32_0 : i32, i32
  }
  func.func @transform_10(%arg0: i32) -> (i32, i32) {
    %c0_i32 = arith.constant 0 : i32
    %c0_i32_0 = arith.constant 0 : i32
    %c0_i32_1 = arith.constant 0 : i32
    return %c0_i32, %c0_i32_0 : i32, i32
  }
  func.func @transform_11(%arg0: i32) -> (i32, i32) {
    %c0_i32 = arith.constant 0 : i32
    %c0_i32_0 = arith.constant 0 : i32
    return %arg0, %c0_i32 : i32, i32
  }
}

</mosaic_0001>

<llo_original>
// kernel: tpu_custom_call.1
$region0: #{tpu_custom_call.1}
  #allocation0 [shape = 'u32[]', space=smem, size = 0x4, offset = 0x4, fixed_abs, tag = 'smem constant byte address 0x4 - core index']
  #allocation1 [shape = 'u32[144,128]{1,0:T(1,128)}', space=vmem, size = 0x12000, scoped, tag = 'internal scratch']
  %s0 = inlined_call_operand.hbm [shape: f32[8,16], index: 0, kind: input, shape index: {}]
  %s1 = inlined_call_operand.hbm [shape: f32[8,8], index: 1, kind: input, shape index: {}]
  %s2 = inlined_call_operand.hbm [shape: bf16[16,128], index: 2, kind: input, shape index: {}]
  %s3 = inlined_call_operand.vmem [shape: bf16[8,128], index: 3, kind: input, shape index: {}]
  %s4 = inlined_call_operand.vmem [shape: f32[1,128], index: 4, kind: input, shape index: {}]
  %s5 = inlined_call_operand.hbm [shape: bf16[128,128], index: 5, kind: input, shape index: {}]
  %s6 = inlined_call_operand.vmem [shape: f32[1,128], index: 6, kind: input, shape index: {}]
  %s7 = inlined_call_operand.hbm [shape: bf16[128,128], index: 7, kind: input, shape index: {}]
  %s8 = inlined_call_operand.vmem [shape: f32[1,128], index: 8, kind: input, shape index: {}]
  %s9 = inlined_call_operand.hbm [shape: bf16[128,128], index: 9, kind: input, shape index: {}]
  %s10 = inlined_call_operand.vmem [shape: f32[1,128], index: 10, kind: input, shape index: {}]
  %s11 = inlined_call_operand.hbm [shape: f32[8,10], index: 11, kind: output, shape index: {}]
  %s12 = sld [smem:[#allocation0]]
  $region78: #{tpu_custom_call.1} parent=0
    _
  %s14 = ssub.s32 1, %s12
  %s15 = scalar_select 0, %s14, %s12
  $region1: #{tpu_custom_call.1} parent=0
    #allocation2 [shape = 'u8[4096]{0}', space=vmem, size = 0x1000, scoped, tag = 'input window, operand 0, single buffered']
    #allocation3 [shape = 's32[1]{0}', space=sflag, size = 0x4, scoped, tag = 'scoped memory for tpu_custom_call.1']
    #allocation4 [shape = 's32[1]{0}', space=sflag, size = 0x4, scoped, tag = 'scoped memory for tpu_custom_call.1']
    #allocation5 [shape = 'u8[4096]{0}', space=vmem, size = 0x1000, scoped, tag = 'input window, operand 1, single buffered']
    #allocation6 [shape = 's32[1]{0}', space=sflag, size = 0x4, scoped, tag = 'scoped memory for tpu_custom_call.1']
    #allocation7 [shape = 'u8[4096]{0}', space=vmem, size = 0x1000, scoped, tag = 'input window, operand 2, single buffered']
    #allocation8 [shape = 'u8[32768]{0}', space=vmem, size = 0x8000, scoped, tag = 'input window, operand 5, single buffered']
    #allocation9 [shape = 's32[1]{0}', space=sflag, size = 0x4, scoped, tag = 'scoped memory for tpu_custom_call.1']
    #allocation10 [shape = 'u8[32768]{0}', space=vmem, size = 0x8000, scoped, tag = 'input window, operand 7, single buffered']
    #allocation11 [shape = 'u8[32768]{0}', space=vmem, size = 0x8000, scoped, tag = 'input window, operand 9, single buffered']
    #allocation12 [shape = 's32[1]{0}', space=sflag, size = 0x4, scoped, tag = 'scoped memory for tpu_custom_call.1']
    #allocation13 [shape = 'u8[4096]{0}', space=vmem, size = 0x1000, scoped, tag = 'output window, operand 0, single buffered']
    %16 = vsyncpa [#allocation3], 0
    %17 = vsyncpa [#allocation6], 0
    %18 = vsyncpa [#allocation9], 0
    %19 = vsyncpa [#allocation12], 0
    %20 = vsyncpa [#allocation4], 0
    // Predicated region
    $region2: #{tpu_custom_call.1} parent=1 // pred_check
      _
    $region3: #{tpu_custom_call.1} parent=1 // pred_check_branch
      %22 = sbr.rel (0) target = $region5
    $region4: #{tpu_custom_call.1} parent=1 // pred_region
      %s24 = ssub.s32 128, 128
      %25 = vsyncadd [#allocation3], %s24
      %s27 = sshll.u32 [#allocation2], 4
      %s28 = int_to_ptr.vmem [resolvable:$true] %s27
      %30 = dma.hbm_to_vmem [thread:$0]  %s0, 128, %s28, [#allocation3]
    $region5: #{tpu_custom_call.1} parent=1 // pred_fallthru
      _
    // Predicated region
    $region6: #{tpu_custom_call.1} parent=1 // pred_check
      _
    $region7: #{tpu_custom_call.1} parent=1 // pred_check_branch
      %32 = sbr.rel (0) target = $region9
    $region8: #{tpu_custom_call.1} parent=1 // pred_region
      %s34 = ssub.s32 128, 128
      %35 = vsyncadd [#allocation6], %s34
      %s37 = sshll.u32 [#allocation5], 4
      %s38 = int_to_ptr.vmem [resolvable:$true] %s37
      %40 = dma.hbm_to_vmem [thread:$0]  %s1, 128, %s38, [#allocation6]
    $region9: #{tpu_custom_call.1} parent=1 // pred_fallthru
      _
    // Predicated region
    $region10: #{tpu_custom_call.1} parent=1 // pred_check
      _
    $region11: #{tpu_custom_call.1} parent=1 // pred_check_branch
      %42 = sbr.rel (0) target = $region13
    $region12: #{tpu_custom_call.1} parent=1 // pred_region
      %s44 = ssub.s32 128, 128
      %45 = vsyncadd [#allocation6], %s44
      %s46 = sshll.u32 [#allocation7], 4
      %s47 = int_to_ptr.vmem [resolvable:$true] %s46
      %52 = dma.hbm_to_vmem [thread:$0]  %s2, 128, %s47, [#allocation6], 64, 64, 4
    $region13: #{tpu_custom_call.1} parent=1 // pred_fallthru
      _
    // Predicated region
    $region14: #{tpu_custom_call.1} parent=1 // pred_check
      _
    $region15: #{tpu_custom_call.1} parent=1 // pred_check_branch
      %54 = sbr.rel (0) target = $region17
    $region16: #{tpu_custom_call.1} parent=1 // pred_region
      _
    $region17: #{tpu_custom_call.1} parent=1 // pred_fallthru
      _
    // Predicated region
    $region18: #{tpu_custom_call.1} parent=1 // pred_check
      _
    $region19: #{tpu_custom_call.1} parent=1 // pred_check_branch
      %56 = sbr.rel (0) target = $region21
    $region20: #{tpu_custom_call.1} parent=1 // pred_region
      _
    $region21: #{tpu_custom_call.1} parent=1 // pred_fallthru
      _
    // Predicated region
    $region22: #{tpu_custom_call.1} parent=1 // pred_check
      _
    $region23: #{tpu_custom_call.1} parent=1 // pred_check_branch
      %58 = sbr.rel (0) target = $region25
    $region24: #{tpu_custom_call.1} parent=1 // pred_region
      %s60 = ssub.s32 1024, 1024
      %61 = vsyncadd [#allocation9], %s60
      %s62 = sshll.u32 [#allocation8], 4
      %s63 = int_to_ptr.vmem [resolvable:$true] %s62
      %68 = dma.hbm_to_vmem [thread:$0]  %s5, 1024, %s63, [#allocation9], 64, 64, 4
    $region25: #{tpu_custom_call.1} parent=1 // pred_fallthru
      _
    // Predicated region
    $region26: #{tpu_custom_call.1} parent=1 // pred_check
      _
    $region27: #{tpu_custom_call.1} parent=1 // pred_check_branch
      %70 = sbr.rel (0) target = $region29
    $region28: #{tpu_custom_call.1} parent=1 // pred_region
      _
    $region29: #{tpu_custom_call.1} parent=1 // pred_fallthru
      _
    // Predicated region
    $region30: #{tpu_custom_call.1} parent=1 // pred_check
      _
    $region31: #{tpu_custom_call.1} parent=1 // pred_check_branch
      %72 = sbr.rel (0) target = $region33
    $region32: #{tpu_custom_call.1} parent=1 // pred_region
      %s74 = ssub.s32 1024, 1024
      %75 = vsyncadd [#allocation9], %s74
      %s76 = sshll.u32 [#allocation10], 4
      %s77 = int_to_ptr.vmem [resolvable:$true] %s76
      %82 = dma.hbm_to_vmem [thread:$0]  %s7, 1024, %s77, [#allocation9], 64, 64, 4
    $region33: #{tpu_custom_call.1} parent=1 // pred_fallthru
      _
    // Predicated region
    $region34: #{tpu_custom_call.1} parent=1 // pred_check
      _
    $region35: #{tpu_custom_call.1} parent=1 // pred_check_branch
      %84 = sbr.rel (0) target = $region37
    $region36: #{tpu_custom_call.1} parent=1 // pred_region
      _
    $region37: #{tpu_custom_call.1} parent=1 // pred_fallthru
      _
    // Predicated region
    $region38: #{tpu_custom_call.1} parent=1 // pred_check
      _
    $region39: #{tpu_custom_call.1} parent=1 // pred_check_branch
      %86 = sbr.rel (0) target = $region41
    $region40: #{tpu_custom_call.1} parent=1 // pred_region
      %s88 = ssub.s32 1024, 1024
      %89 = vsyncadd [#allocation12], %s88
      %s90 = sshll.u32 [#allocation11], 4
      %s91 = int_to_ptr.vmem [resolvable:$true] %s90
      %96 = dma.hbm_to_vmem [thread:$0]  %s9, 1024, %s91, [#allocation12], 64, 64, 4
    $region41: #{tpu_custom_call.1} parent=1 // pred_fallthru
      _
    // Predicated region
    $region42: #{tpu_custom_call.1} parent=1 // pred_check
      _
    $region43: #{tpu_custom_call.1} parent=1 // pred_check_branch
      %98 = sbr.rel (0) target = $region45
    $region44: #{tpu_custom_call.1} parent=1 // pred_region
      _
    $region45: #{tpu_custom_call.1} parent=1 // pred_fallthru
      _
    // Predicated region
    $region46: #{tpu_custom_call.1} parent=1 // pred_check
      _
    $region47: #{tpu_custom_call.1} parent=1 // pred_check_branch
      %100 = sbr.rel (0) target = $region49
    $region48: #{tpu_custom_call.1} parent=1 // pred_region
      %101 = dma.done [#allocation3], 128
    $region49: #{tpu_custom_call.1} parent=1 // pred_fallthru
      _
    // Predicated region
    $region50: #{tpu_custom_call.1} parent=1 // pred_check
      _
    $region51: #{tpu_custom_call.1} parent=1 // pred_check_branch
      %103 = sbr.rel (0) target = $region53
    $region52: #{tpu_custom_call.1} parent=1 // pred_region
      %104 = dma.done [#allocation6], 128
    $region53: #{tpu_custom_call.1} parent=1 // pred_fallthru
      _
    // Predicated region
    $region54: #{tpu_custom_call.1} parent=1 // pred_check
      _
    $region55: #{tpu_custom_call.1} parent=1 // pred_check_branch
      %106 = sbr.rel (0) target = $region57
    $region56: #{tpu_custom_call.1} parent=1 // pred_region
      %107 = dma.done [#allocation6], 128
    $region57: #{tpu_custom_call.1} parent=1 // pred_fallthru
      _
    // Predicated region
    $region58: #{tpu_custom_call.1} parent=1 // pred_check
      _
    $region59: #{tpu_custom_call.1} parent=1 // pred_check_branch
      %109 = sbr.rel (0) target = $region61
    $region60: #{tpu_custom_call.1} parent=1 // pred_region
      %110 = dma.done [#allocation9], 1024
    $region61: #{tpu_custom_call.1} parent=1 // pred_fallthru
      _
    // Predicated region
    $region62: #{tpu_custom_call.1} parent=1 // pred_check
      _
    $region63: #{tpu_custom_call.1} parent=1 // pred_check_branch
      %112 = sbr.rel (0) target = $region65
    $region64: #{tpu_custom_call.1} parent=1 // pred_region
      %113 = dma.done [#allocation9], 1024
    $region65: #{tpu_custom_call.1} parent=1 // pred_fallthru
      _
    // Predicated region
    $region66: #{tpu_custom_call.1} parent=1 // pred_check
      _
    $region67: #{tpu_custom_call.1} parent=1 // pred_check_branch
      %115 = sbr.rel (0) target = $region69
    $region68: #{tpu_custom_call.1} parent=1 // pred_region
      %116 = dma.done [#allocation12], 1024
    $region69: #{tpu_custom_call.1} parent=1 // pred_fallthru
      _
    %v118 = vld [vmem:[#allocation2] sm:$0xff]
    %v119 = vpack.c.bf16 %v118, %v118
    %v120 = vld [vmem:[#allocation7] sm:$0xf]
    %v121 = vld [vmem:[#allocation7 + $0x4] sm:$0xf]
    %v122 = vld [vmem:[#allocation5] sm:$0xff]
    %v123 = vpack.c.bf16 %v122, %v122
    %v124 = vld [vmem:[%s3] sm:$0xf]
    %vm125 = vcmask 64512
    %v127 = vsel %vm125, %v123, 0
    %vm129 = vcmask 1043456
    %v131 = vsel %vm129, %v124, 0
    %133 = vmatprep.subr.bf16.mxu0 0
    %134 = vmatpush1.bf16.msra.mxu0 %v131
    %135 = vmatprep.subr.bf16.mxu0 0
    %136 = vmatpush1.bf16.msra.mxu0 0
    %137 = vmatprep.subr.bf16.mxu0 0
    %138 = vmatpush1.bf16.msra.mxu0 0
    %139 = vmatprep.subr.bf16.mxu0 0
    %140 = vmatpush1.bf16.msra.mxu0 0
    %141 = vmatprep.subr.bf16.mxu0 0
    %142 = vmatpush1.bf16.msra.mxu0 0
    %143 = vmatprep.subr.bf16.mxu0 0
    %144 = vmatpush1.bf16.msra.mxu0 0
    %145 = vmatprep.subr.bf16.mxu0 0
    %146 = vmatpush1.bf16.msra.mxu0 0
    %147 = vmatprep.subr.bf16.mxu0 0
    %148 = vmatpush1.bf16.msra.mxu0 0
    %149 = vmatprep.subr.bf16.mxu0 0
    %150 = vmatpush1.bf16.msra.mxu0 0
    %151 = vmatprep.subr.bf16.mxu0 0
    %152 = vmatpush1.bf16.msra.mxu0 0
    %153 = vmatprep.subr.bf16.mxu0 0
    %154 = vmatpush1.bf16.msra.mxu0 0
    %155 = vmatprep.subr.bf16.mxu0 0
    %156 = vmatpush1.bf16.msra.mxu0 0
    %157 = vmatprep.subr.bf16.mxu0 0
    %158 = vmatpush1.bf16.msra.mxu0 0
    %159 = vmatprep.subr.bf16.mxu0 0
    %160 = vmatpush1.bf16.msra.mxu0 0
    %161 = vmatprep.subr.bf16.mxu0 0
    %162 = vmatpush1.bf16.msra.mxu0 0
    %163 = vmatprep.subr.bf16.mxu0 0
    %164 = vmatpush1.bf16.msra.mxu0 0
    %165 = vmatprep.mubr.bf16.mxu0 0
    %166 = vmatmul.mubr.bf16.gmra.mrb[0].mxu0 %v127
    %v167 = vpop.f32.mrb[0].mxu0
    %v168 = vadd.f32 0.0, %v167
    %v169 = vpop.f32.mrb[0].mxu0
    %v170 = vpop.f32.mrb[0].mxu0
    %v171 = vpop.f32.mrb[0].mxu0
    %172 = vdwg.mxu0
    %v175 = vunpack.c.l.b16 %v120
    %v176 = vunpack.c.l.b16 %v121
    %v177 = vpack.c.b16 %v176, %v175
    %vm179 = vcmask 130048
    %v181 = vsel %vm179, %v119, 0
    %183 = vmatprep.subr.bf16.mxu0 0
    %184 = vmatpush1.bf16.msra.mxu0 %v177
    %185 = vmatprep.subr.bf16.mxu0 0
    %186 = vmatpush1.bf16.msra.mxu0 0
    %187 = vmatprep.subr.bf16.mxu0 0
    %188 = vmatpush1.bf16.msra.mxu0 0
    %189 = vmatprep.subr.bf16.mxu0 0
    %190 = vmatpush1.bf16.msra.mxu0 0
    %191 = vmatprep.subr.bf16.mxu0 0
    %192 = vmatpush1.bf16.msra.mxu0 0
    %193 = vmatprep.subr.bf16.mxu0 0
    %194 = vmatpush1.bf16.msra.mxu0 0
    %195 = vmatprep.subr.bf16.mxu0 0
    %196 = vmatpush1.bf16.msra.mxu0 0
    %197 = vmatprep.subr.bf16.mxu0 0
    %198 = vmatpush1.bf16.msra.mxu0 0
    %199 = vmatprep.subr.bf16.mxu0 0
    %200 = vmatpush1.bf16.msra.mxu0 0
    %201 = vmatprep.subr.bf16.mxu0 0
    %202 = vmatpush1.bf16.msra.mxu0 0
    %203 = vmatprep.subr.bf16.mxu0 0
    %204 = vmatpush1.bf16.msra.mxu0 0
    %205 = vmatprep.subr.bf16.mxu0 0
    %206 = vmatpush1.bf16.msra.mxu0 0
    %207 = vmatprep.subr.bf16.mxu0 0
    %208 = vmatpush1.bf16.msra.mxu0 0
    %209 = vmatprep.subr.bf16.mxu0 0
    %210 = vmatpush1.bf16.msra.mxu0 0
    %211 = vmatprep.subr.bf16.mxu0 0
    %212 = vmatpush1.bf16.msra.mxu0 0
    %213 = vmatprep.subr.bf16.mxu0 0
    %214 = vmatpush1.bf16.msra.mxu0 0
    %215 = vmatprep.mubr.bf16.mxu0 0
    %216 = vmatmul.mubr.bf16.gmra.mrb[0].mxu0 %v181
    %v217 = vpop.f32.mrb[0].mxu0
    %v218 = vadd.f32 %v168, %v217
    %v219 = vpop.f32.mrb[0].mxu0
    %v220 = vpop.f32.mrb[0].mxu0
    %v221 = vpop.f32.mrb[0].mxu0
    %222 = vdwg.mxu0
    %v223 = vld [vmem:[%s4] sm:$0x1]
    %v225 = vlaneseq
    %v226 = vshrl.u32 %v225, 7
    %v227 = vsub.s32 0, %v226
    %v228 = vrot.slane %v223, %v227
    %v230 = vadd.f32 %v218, %v228
    %v231 = vmax.f32 %v230, 0.0
    %v232 = vpack.c.bf16 %v231, %v231
    %v233 = vld [vmem:[#allocation8] sm:$0xf]
    %v234 = vld [vmem:[#allocation8 + $0x4] sm:$0xf]
    %v235 = vld [vmem:[#allocation8 + $0x8] sm:$0xf]
    %v236 = vld [vmem:[#allocation8 + $0xc] sm:$0xf]
    %v237 = vld [vmem:[#allocation8 + $0x10] sm:$0xf]
    %v238 = vld [vmem:[#allocation8 + $0x14] sm:$0xf]
    %v239 = vld [vmem:[#allocation8 + $0x18] sm:$0xf]
    %v240 = vld [vmem:[#allocation8 + $0x1c] sm:$0xf]
    %v241 = vld [vmem:[#allocation8 + $0x20] sm:$0xf]
    %v242 = vld [vmem:[#allocation8 + $0x24] sm:$0xf]
    %v243 = vld [vmem:[#allocation8 + $0x28] sm:$0xf]
    %v244 = vld [vmem:[#allocation8 + $0x2c] sm:$0xf]
    %v245 = vld [vmem:[#allocation8 + $0x30] sm:$0xf]
    %v246 = vld [vmem:[#allocation8 + $0x34] sm:$0xf]
    %v247 = vld [vmem:[#allocation8 + $0x38] sm:$0xf]
    %v248 = vld [vmem:[#allocation8 + $0x3c] sm:$0xf]
    %v249 = vld [vmem:[%s6] sm:$0x1]
    %v251 = vlaneseq
    %v252 = vshrl.u32 %v251, 7
    %v253 = vsub.s32 0, %v252
    %v254 = vrot.slane %v249, %v253
    %v272 = vunpack.c.l.b16 %v233
    %v273 = vunpack.c.l.b16 %v234
    %v274 = vunpack.c.l.b16 %v235
    %v275 = vunpack.c.l.b16 %v236
    %v276 = vunpack.c.l.b16 %v237
    %v277 = vunpack.c.l.b16 %v238
    %v278 = vunpack.c.l.b16 %v239
    %v279 = vunpack.c.l.b16 %v240
    %v280 = vunpack.c.l.b16 %v241
    %v281 = vunpack.c.l.b16 %v242
    %v282 = vunpack.c.l.b16 %v243
    %v283 = vunpack.c.l.b16 %v244
    %v284 = vunpack.c.l.b16 %v245
    %v285 = vunpack.c.l.b16 %v246
    %v286 = vunpack.c.l.b16 %v247
    %v287 = vunpack.c.l.b16 %v248
    %v288 = vpack.c.b16 %v273, %v272
    %v289 = vpack.c.b16 %v275, %v274
    %v290 = vpack.c.b16 %v277, %v276
    %v291 = vpack.c.b16 %v279, %v278
    %v292 = vpack.c.b16 %v281, %v280
    %v293 = vpack.c.b16 %v283, %v282
    %v294 = vpack.c.b16 %v285, %v284
    %v295 = vpack.c.b16 %v287, %v286
    %304 = vmatprep.subr.bf16.mxu0 0
    %305 = vmatpush1.bf16.msra.mxu0 %v288
    %306 = vmatprep.subr.bf16.mxu0 0
    %307 = vmatpush1.bf16.msra.mxu0 %v289
    %308 = vmatprep.subr.bf16.mxu0 0
    %309 = vmatpush1.bf16.msra.mxu0 %v290
    %310 = vmatprep.subr.bf16.mxu0 0
    %311 = vmatpush1.bf16.msra.mxu0 %v291
    %312 = vmatprep.subr.bf16.mxu0 0
    %313 = vmatpush1.bf16.msra.mxu0 %v292
    %314 = vmatprep.subr.bf16.mxu0 0
    %315 = vmatpush1.bf16.msra.mxu0 %v293
    %316 = vmatprep.subr.bf16.mxu0 0
    %317 = vmatpush1.bf16.msra.mxu0 %v294
    %318 = vmatprep.subr.bf16.mxu0 0
    %319 = vmatpush1.bf16.msra.mxu0 %v295
    %320 = vmatprep.subr.bf16.mxu0 0
    %321 = vmatpush1.bf16.msra.mxu0 0
    %322 = vmatprep.subr.bf16.mxu0 0
    %323 = vmatpush1.bf16.msra.mxu0 0
    %324 = vmatprep.subr.bf16.mxu0 0
    %325 = vmatpush1.bf16.msra.mxu0 0
    %326 = vmatprep.subr.bf16.mxu0 0
    %327 = vmatpush1.bf16.msra.mxu0 0
    %328 = vmatprep.subr.bf16.mxu0 0
    %329 = vmatpush1.bf16.msra.mxu0 0
    %330 = vmatprep.subr.bf16.mxu0 0
    %331 = vmatpush1.bf16.msra.mxu0 0
    %332 = vmatprep.subr.bf16.mxu0 0
    %333 = vmatpush1.bf16.msra.mxu0 0
    %334 = vmatprep.subr.bf16.mxu0 0
    %335 = vmatpush1.bf16.msra.mxu0 0
    %336 = vmatprep.mubr.bf16.mxu0 0
    %337 = vmatmul.mubr.bf16.gmra.mrb[0].mxu0 %v232
    %v338 = vpop.f32.mrb[0].mxu0
    %v339 = vadd.f32 %v254, %v338
    %v340 = vpop.f32.mrb[0].mxu0
    %v341 = vpop.f32.mrb[0].mxu0
    %v342 = vpop.f32.mrb[0].mxu0
    %343 = vdwg.mxu0
    %v344 = vmax.f32 %v339, 0.0
    %v345 = vpack.c.bf16 %v344, %v344
    %v346 = vld [vmem:[#allocation10] sm:$0xf]
    %v347 = vld [vmem:[#allocation10 + $0x4] sm:$0xf]
    %v348 = vld [vmem:[#allocation10 + $0x8] sm:$0xf]
    %v349 = vld [vmem:[#allocation10 + $0xc] sm:$0xf]
    %v350 = vld [vmem:[#allocation10 + $0x10] sm:$0xf]
    %v351 = vld [vmem:[#allocation10 + $0x14] sm:$0xf]
    %v352 = vld [vmem:[#allocation10 + $0x18] sm:$0xf]
    %v353 = vld [vmem:[#allocation10 + $0x1c] sm:$0xf]
    %v354 = vld [vmem:[#allocation10 + $0x20] sm:$0xf]
    %v355 = vld [vmem:[#allocation10 + $0x24] sm:$0xf]
    %v356 = vld [vmem:[#allocation10 + $0x28] sm:$0xf]
    %v357 = vld [vmem:[#allocation10 + $0x2c] sm:$0xf]
    %v358 = vld [vmem:[#allocation10 + $0x30] sm:$0xf]
    %v359 = vld [vmem:[#allocation10 + $0x34] sm:$0xf]
    %v360 = vld [vmem:[#allocation10 + $0x38] sm:$0xf]
    %v361 = vld [vmem:[#allocation10 + $0x3c] sm:$0xf]
    %v362 = vld [vmem:[%s8] sm:$0x1]
    %v364 = vlaneseq
    %v365 = vshrl.u32 %v364, 7
    %v366 = vsub.s32 0, %v365
    %v367 = vrot.slane %v362, %v366
    %v385 = vunpack.c.l.b16 %v346
    %v386 = vunpack.c.l.b16 %v347
    %v387 = vunpack.c.l.b16 %v348
    %v388 = vunpack.c.l.b16 %v349
    %v389 = vunpack.c.l.b16 %v350
    %v390 = vunpack.c.l.b16 %v351
    %v391 = vunpack.c.l.b16 %v352
    %v392 = vunpack.c.l.b16 %v353
    %v393 = vunpack.c.l.b16 %v354
    %v394 = vunpack.c.l.b16 %v355
    %v395 = vunpack.c.l.b16 %v356
    %v396 = vunpack.c.l.b16 %v357
    %v397 = vunpack.c.l.b16 %v358
    %v398 = vunpack.c.l.b16 %v359
    %v399 = vunpack.c.l.b16 %v360
    %v400 = vunpack.c.l.b16 %v361
    %v401 = vpack.c.b16 %v386, %v385
    %v402 = vpack.c.b16 %v388, %v387
    %v403 = vpack.c.b16 %v390, %v389
    %v404 = vpack.c.b16 %v392, %v391
    %v405 = vpack.c.b16 %v394, %v393
    %v406 = vpack.c.b16 %v396, %v395
    %v407 = vpack.c.b16 %v398, %v397
    %v408 = vpack.c.b16 %v400, %v399
    %417 = vmatprep.subr.bf16.mxu0 0
    %418 = vmatpush1.bf16.msra.mxu0 %v401
    %419 = vmatprep.subr.bf16.mxu0 0
    %420 = vmatpush1.bf16.msra.mxu0 %v402
    %421 = vmatprep.subr.bf16.mxu0 0
    %422 = vmatpush1.bf16.msra.mxu0 %v403
    %423 = vmatprep.subr.bf16.mxu0 0
    %424 = vmatpush1.bf16.msra.mxu0 %v404
    %425 = vmatprep.subr.bf16.mxu0 0
    %426 = vmatpush1.bf16.msra.mxu0 %v405
    %427 = vmatprep.subr.bf16.mxu0 0
    %428 = vmatpush1.bf16.msra.mxu0 %v406
    %429 = vmatprep.subr.bf16.mxu0 0
    %430 = vmatpush1.bf16.msra.mxu0 %v407
    %431 = vmatprep.subr.bf16.mxu0 0
    %432 = vmatpush1.bf16.msra.mxu0 %v408
    %433 = vmatprep.subr.bf16.mxu0 0
    %434 = vmatpush1.bf16.msra.mxu0 0
    %435 = vmatprep.subr.bf16.mxu0 0
    %436 = vmatpush1.bf16.msra.mxu0 0
    %437 = vmatprep.subr.bf16.mxu0 0
    %438 = vmatpush1.bf16.msra.mxu0 0
    %439 = vmatprep.subr.bf16.mxu0 0
    %440 = vmatpush1.bf16.msra.mxu0 0
    %441 = vmatprep.subr.bf16.mxu0 0
    %442 = vmatpush1.bf16.msra.mxu0 0
    %443 = vmatprep.subr.bf16.mxu0 0
    %444 = vmatpush1.bf16.msra.mxu0 0
    %445 = vmatprep.subr.bf16.mxu0 0
    %446 = vmatpush1.bf16.msra.mxu0 0
    %447 = vmatprep.subr.bf16.mxu0 0
    %448 = vmatpush1.bf16.msra.mxu0 0
    %449 = vmatprep.mubr.bf16.mxu0 0
    %450 = vmatmul.mubr.bf16.gmra.mrb[0].mxu0 %v345
    %v451 = vpop.f32.mrb[0].mxu0
    %v452 = vadd.f32 %v367, %v451
    %v453 = vpop.f32.mrb[0].mxu0
    %v454 = vpop.f32.mrb[0].mxu0
    %v455 = vpop.f32.mrb[0].mxu0
    %456 = vdwg.mxu0
    %v457 = vmax.f32 %v452, 0.0
    %v458 = vpack.c.bf16 %v457, %v457
    %v459 = vld [vmem:[#allocation11] sm:$0xf]
    %v460 = vld [vmem:[#allocation11 + $0x4] sm:$0xf]
    %v461 = vld [vmem:[#allocation11 + $0x8] sm:$0xf]
    %v462 = vld [vmem:[#allocation11 + $0xc] sm:$0xf]
    %v463 = vld [vmem:[#allocation11 + $0x10] sm:$0xf]
    %v464 = vld [vmem:[#allocation11 + $0x14] sm:$0xf]
    %v465 = vld [vmem:[#allocation11 + $0x18] sm:$0xf]
    %v466 = vld [vmem:[#allocation11 + $0x1c] sm:$0xf]
    %v467 = vld [vmem:[#allocation11 + $0x20] sm:$0xf]
    %v468 = vld [vmem:[#allocation11 + $0x24] sm:$0xf]
    %v469 = vld [vmem:[#allocation11 + $0x28] sm:$0xf]
    %v470 = vld [vmem:[#allocation11 + $0x2c] sm:$0xf]
    %v471 = vld [vmem:[#allocation11 + $0x30] sm:$0xf]
    %v472 = vld [vmem:[#allocation11 + $0x34] sm:$0xf]
    %v473 = vld [vmem:[#allocation11 + $0x38] sm:$0xf]
    %v474 = vld [vmem:[#allocation11 + $0x3c] sm:$0xf]
    %v475 = vld [vmem:[%s10] sm:$0x1]
    %v477 = vlaneseq
    %v478 = vshrl.u32 %v477, 7
    %v479 = vsub.s32 0, %v478
    %v480 = vrot.slane %v475, %v479
    %v498 = vunpack.c.l.b16 %v459
    %v499 = vunpack.c.l.b16 %v460
    %v500 = vunpack.c.l.b16 %v461
    %v501 = vunpack.c.l.b16 %v462
    %v502 = vunpack.c.l.b16 %v463
    %v503 = vunpack.c.l.b16 %v464
    %v504 = vunpack.c.l.b16 %v465
    %v505 = vunpack.c.l.b16 %v466
    %v506 = vunpack.c.l.b16 %v467
    %v507 = vunpack.c.l.b16 %v468
    %v508 = vunpack.c.l.b16 %v469
    %v509 = vunpack.c.l.b16 %v470
    %v510 = vunpack.c.l.b16 %v471
    %v511 = vunpack.c.l.b16 %v472
    %v512 = vunpack.c.l.b16 %v473
    %v513 = vunpack.c.l.b16 %v474
    %v514 = vpack.c.b16 %v499, %v498
    %v515 = vpack.c.b16 %v501, %v500
    %v516 = vpack.c.b16 %v503, %v502
    %v517 = vpack.c.b16 %v505, %v504
    %v518 = vpack.c.b16 %v507, %v506
    %v519 = vpack.c.b16 %v509, %v508
    %v520 = vpack.c.b16 %v511, %v510
    %v521 = vpack.c.b16 %v513, %v512
    %530 = vmatprep.subr.bf16.mxu0 0
    %531 = vmatpush1.bf16.msra.mxu0 %v514
    %532 = vmatprep.subr.bf16.mxu0 0
    %533 = vmatpush1.bf16.msra.mxu0 %v515
    %534 = vmatprep.subr.bf16.mxu0 0
    %535 = vmatpush1.bf16.msra.mxu0 %v516
    %536 = vmatprep.subr.bf16.mxu0 0
    %537 = vmatpush1.bf16.msra.mxu0 %v517
    %538 = vmatprep.subr.bf16.mxu0 0
    %539 = vmatpush1.bf16.msra.mxu0 %v518
    %540 = vmatprep.subr.bf16.mxu0 0
    %541 = vmatpush1.bf16.msra.mxu0 %v519
    %542 = vmatprep.subr.bf16.mxu0 0
    %543 = vmatpush1.bf16.msra.mxu0 %v520
    %544 = vmatprep.subr.bf16.mxu0 0
    %545 = vmatpush1.bf16.msra.mxu0 %v521
    %546 = vmatprep.subr.bf16.mxu0 0
    %547 = vmatpush1.bf16.msra.mxu0 0
    %548 = vmatprep.subr.bf16.mxu0 0
    %549 = vmatpush1.bf16.msra.mxu0 0
    %550 = vmatprep.subr.bf16.mxu0 0
    %551 = vmatpush1.bf16.msra.mxu0 0
    %552 = vmatprep.subr.bf16.mxu0 0
    %553 = vmatpush1.bf16.msra.mxu0 0
    %554 = vmatprep.subr.bf16.mxu0 0
    %555 = vmatpush1.bf16.msra.mxu0 0
    %556 = vmatprep.subr.bf16.mxu0 0
    %557 = vmatpush1.bf16.msra.mxu0 0
    %558 = vmatprep.subr.bf16.mxu0 0
    %559 = vmatpush1.bf16.msra.mxu0 0
    %560 = vmatprep.subr.bf16.mxu0 0
    %561 = vmatpush1.bf16.msra.mxu0 0
    %562 = vmatprep.mubr.bf16.mxu0 0
    %563 = vmatmul.mubr.bf16.gmra.mrb[0].mxu0 %v458
    %v564 = vpop.f32.mrb[0].mxu0
    %v565 = vadd.f32 %v480, %v564
    %v566 = vpop.f32.mrb[0].mxu0
    %v567 = vpop.f32.mrb[0].mxu0
    %v568 = vpop.f32.mrb[0].mxu0
    %569 = vdwg.mxu0
    %vm570 = vcmask 80896
    %571 = vst.msk [vmem:[#allocation13] sm:$0xff] %vm570, %v565
    // Predicated region
    $region70: #{tpu_custom_call.1} parent=1 // pred_check
      _
    $region71: #{tpu_custom_call.1} parent=1 // pred_check_branch
      %573 = sbr.rel (0) target = $region73
    $region72: #{tpu_custom_call.1} parent=1 // pred_region
      %s575 = ssub.s32 128, 128
      %576 = vsyncadd [#allocation4], %s575
      %s578 = sshll.u32 [#allocation13], 4
      %s579 = int_to_ptr.vmem [resolvable:$true] %s578
      %581 = dma.vmem_to_hbm [thread:$0]  %s579, 128, %s11, [#allocation4]
    $region73: #{tpu_custom_call.1} parent=1 // pred_fallthru
      _
    // Predicated region
    $region74: #{tpu_custom_call.1} parent=1 // pred_check
      _
    $region75: #{tpu_custom_call.1} parent=1 // pred_check_branch
      %583 = sbr.rel (0) target = $region77
    $region76: #{tpu_custom_call.1} parent=1 // pred_region
      %584 = dma.done [#allocation4], 128
    $region77: #{tpu_custom_call.1} parent=1 // pred_fallthru
      _
    %585 = vsyncpa [#allocation3], 1
    %586 = vsyncpa [#allocation6], 1
    %587 = vsyncpa [#allocation9], 1
    %588 = vsyncpa [#allocation12], 1
    %589 = vsyncpa [#allocation4], 1

</llo_original>
